<compile_context>
chip_gen: v7x
topology: tpu7x:2x2x1
jax: 0.10.0
libtpu: 0.0.40
codegen_flags: <defaults>
</compile_context>

<pallas_src>
import functools
import math

import jax
import jax.numpy as jnp
import numpy as np
from jax.experimental import pallas as pl
from jax.experimental.pallas import tpu as pltpu

F32 = jnp.float32


def _row_tile(m, cap):
    """Largest power-of-two row tile <= cap that divides m (fallback: m)."""
    for t in (4096, 2048, 1024, 512, 256, 128, 64, 32, 16, 8):
        if t <= cap and t <= m and m % t == 0:
            return t
    return m


# ---------------------------------------------------------------------------
# Kernel 1: fused  y = [relu]((x @ W + b) * scale + shift)   (used for proj)
# ---------------------------------------------------------------------------
def _linear_bn_act_kernel(x_ref, w_ref, b_ref, s_ref, t_ref, o_ref, *, relu):
    y = jnp.dot(x_ref[...], w_ref[...], preferred_element_type=jnp.float32)
    y = (y + b_ref[...]) * s_ref[...] + t_ref[...]
    if relu:
        y = jnp.maximum(y, 0.0)
    o_ref[...] = y.astype(o_ref.dtype)


def fused_linear(x, w, b, scale, shift, *, relu):
    m, cin = x.shape
    cout = w.shape[1]
    tm = _row_tile(m, cap=2048)
    return pl.pallas_call(
        functools.partial(_linear_bn_act_kernel, relu=relu),
        out_shape=jax.ShapeDtypeStruct((m, cout), F32),
        grid_spec=pltpu.PrefetchScalarGridSpec(
            num_scalar_prefetch=0,
            grid=(m // tm,),
            in_specs=[
                pl.BlockSpec((tm, cin), lambda i: (i, 0)),
                pl.BlockSpec((cin, cout), lambda i: (0, 0)),
                pl.BlockSpec((1, cout), lambda i: (0, 0)),
                pl.BlockSpec((1, cout), lambda i: (0, 0)),
                pl.BlockSpec((1, cout), lambda i: (0, 0)),
            ],
            out_specs=pl.BlockSpec((tm, cout), lambda i: (i, 0)),
        ),
        compiler_params=pltpu.CompilerParams(dimension_semantics=("parallel",)),
    )(x, w, b, scale, shift)


# ---------------------------------------------------------------------------
# Kernel 2: fused  f1 = relu(BN(x @ Wfc1)) ; qkv = act(BN(f1 @ [Wq|Wk|Wv] + b))
# One lane-dense [tm, 3C] output; f1 never leaves VMEM.  `rmask` selects ReLU
# for the q/k columns and identity for the v columns.
# ---------------------------------------------------------------------------
def _fc1_qkv_kernel(x_ref, wf_ref, sf_ref, tf_ref,
                    wq_ref, bq_ref, sq_ref, tq_ref, rm_ref, o_ref):
    f1 = jnp.dot(x_ref[...], wf_ref[...], preferred_element_type=jnp.float32)
    f1 = jnp.maximum(f1 * sf_ref[...] + tf_ref[...], 0.0)
    y = jnp.dot(f1, wq_ref[...], preferred_element_type=jnp.float32) + bq_ref[...]
    y = y * sq_ref[...] + tq_ref[...]
    rm = rm_ref[...]
    y = rm * jnp.maximum(y, 0.0) + (1.0 - rm) * y
    o_ref[...] = y.astype(o_ref.dtype)


def fc1_qkv(x, wf, sf, tf, wqkv, bqkv, sqkv, tqkv, rmask):
    m, c = x.shape
    c3 = wqkv.shape[1]
    tm = _row_tile(m, cap=2048)
    return pl.pallas_call(
        _fc1_qkv_kernel,
        out_shape=jax.ShapeDtypeStruct((m, c3), F32),
        grid_spec=pltpu.PrefetchScalarGridSpec(
            num_scalar_prefetch=0,
            grid=(m // tm,),
            in_specs=[
                pl.BlockSpec((tm, c), lambda i: (i, 0)),
                pl.BlockSpec((c, c), lambda i: (0, 0)),
                pl.BlockSpec((1, c), lambda i: (0, 0)),
                pl.BlockSpec((1, c), lambda i: (0, 0)),
                pl.BlockSpec((c, c3), lambda i: (0, 0)),
                pl.BlockSpec((1, c3), lambda i: (0, 0)),
                pl.BlockSpec((1, c3), lambda i: (0, 0)),
                pl.BlockSpec((1, c3), lambda i: (0, 0)),
                pl.BlockSpec((1, c3), lambda i: (0, 0)),
            ],
            out_specs=pl.BlockSpec((tm, c3), lambda i: (i, 0)),
        ),
        compiler_params=pltpu.CompilerParams(dimension_semantics=("parallel",)),
    )(x, wf, sf, tf, wqkv, bqkv, sqkv, tqkv, rmask)


# ---------------------------------------------------------------------------
# Kernel 3: fused GroupedVectorAttention + Block tail.
#   peb   = Linear(relu(BN(Linear(pos))))                (computed in-kernel)
#   rel   = key - q[:,None] + peb ; val = value + peb
#   w     = Linear(relu(BN(Linear(rel))))                (one (tn*K,C)@(C,G))
#   w     = softmax_over_K(w) * mask
#   attn  = sum_K val * (w @ Expand)                     (Expand: (G,C) 0/1)
#   out   = relu(identity + BN3(fc3(relu(BN2(attn)))))
# ---------------------------------------------------------------------------
def _gva_block_kernel(q_ref, kv_ref, pos_ref, mask_ref, id_ref,
                      wpb1_ref, bpb1_ref, spb1_ref, tpb1_ref, wpb2_ref, bpb2_ref,
                      w1_ref, b1_ref, s1_ref, t1_ref, w2_ref, b2_ref,
                      ex_ref, w3_ref, s2_ref, t2_ref, s3_ref, t3_ref, o_ref):
    tn, k, c2 = kv_ref.shape
    c = c2 // 2
    g = ex_ref.shape[0]
    nk = tn * k

    # positional-bias MLP (3 -> C -> C); peb never touches HBM
    pos2 = pos_ref[...].reshape(nk, 3)
    h = jnp.dot(pos2, wpb1_ref[...], preferred_element_type=jnp.float32) + bpb1_ref[...]
    h = jnp.maximum(h * spb1_ref[...] + tpb1_ref[...], 0.0)
    peb = (jnp.dot(h, wpb2_ref[...], preferred_element_type=jnp.float32)
           + bpb2_ref[...]).reshape(tn, k, c)

    kv = kv_ref[...]
    key = kv[:, :, :c]
    val = kv[:, :, c:] + peb
    rel = key - q_ref[...][:, None, :] + peb

    # weight encoding: one batched (tn*K, C) @ (C, G) matmul
    hw = jnp.dot(rel.reshape(nk, c), w1_ref[...],
                 preferred_element_type=jnp.float32) + b1_ref[...]
    hw = jnp.maximum(hw * s1_ref[...] + t1_ref[...], 0.0)
    logit = (jnp.dot(hw, w2_ref[...], preferred_element_type=jnp.float32)
             + b2_ref[...]).reshape(tn, k, g)

    # softmax over the neighbour axis, then mask (same ordering as PTv2)
    mx = jnp.max(logit, axis=1, keepdims=True)
    e = jnp.exp(logit - mx)
    denom = jnp.sum(e, axis=1, keepdims=True)
    w = e * pl.reciprocal(denom, approx=True) * mask_ref[...][:, :, None]

    # expand per-group weights to full channel width on the MXU, reduce over K
    wfull = jnp.dot(w.reshape(nk, g), ex_ref[...],
                    preferred_element_type=jnp.float32).reshape(tn, k, c)
    attn = jnp.sum(val * wfull, axis=1)

    # Block tail: relu(norm2) -> fc3 -> norm3 -> +identity -> relu
    x = jnp.maximum(attn * s2_ref[...] + t2_ref[...], 0.0)
    y = jnp.dot(x, w3_ref[...], preferred_element_type=jnp.float32) * s3_ref[...] + t3_ref[...]
    o_ref[...] = jnp.maximum(id_ref[...] + y, 0.0).astype(o_ref.dtype)


def gva_block(q, kv_g, pos, mask, identity, blk, expand):
    n, c = q.shape
    k = kv_g.shape[1]
    g = expand.shape[0]
    tn = _row_tile(n, cap=256)
    pb1, pb2, we, tail = blk["pb1"], blk["pb2"], blk["we"], blk["tail"]
    row2 = lambda i: (i, 0)
    row3 = lambda i: (i, 0, 0)
    full = lambda i: (0, 0)
    return pl.pallas_call(
        _gva_block_kernel,
        out_shape=jax.ShapeDtypeStruct((n, c), F32),
        grid_spec=pltpu.PrefetchScalarGridSpec(
            num_scalar_prefetch=0,
            grid=(n // tn,),
            in_specs=[
                pl.BlockSpec((tn, c), row2),          # q
                pl.BlockSpec((tn, k, 2 * c), row3),   # gathered [key | value]
                pl.BlockSpec((tn, k, 3), row3),       # relative positions
                pl.BlockSpec((tn, k), row2),          # neighbour mask
                pl.BlockSpec((tn, c), row2),          # identity (residual)
                pl.BlockSpec((3, c), full),           # pb1 w
                pl.BlockSpec((1, c), full),           # pb1 b
                pl.BlockSpec((1, c), full),           # pb1 scale
                pl.BlockSpec((1, c), full),           # pb1 shift
                pl.BlockSpec((c, c), full),           # pb2 w
                pl.BlockSpec((1, c), full),           # pb2 b
                pl.BlockSpec((c, g), full),           # we w1
                pl.BlockSpec((1, g), full),           # we b1
                pl.BlockSpec((1, g), full),           # we scale1
                pl.BlockSpec((1, g), full),           # we shift1
                pl.BlockSpec((g, g), full),           # we w2
                pl.BlockSpec((1, g), full),           # we b2
                pl.BlockSpec((g, c), full),           # group->channel expand
                pl.BlockSpec((c, c), full),           # fc3 w
                pl.BlockSpec((1, c), full),           # norm2 scale
                pl.BlockSpec((1, c), full),           # norm2 shift
                pl.BlockSpec((1, c), full),           # norm3 scale
                pl.BlockSpec((1, c), full),           # norm3 shift
            ],
            out_specs=pl.BlockSpec((tn, c), row2),
        ),
        compiler_params=pltpu.CompilerParams(dimension_semantics=("parallel",)),
    )(q, kv_g, pos, mask, identity,
      pb1["w"], pb1["b"], pb1["s"], pb1["t"], pb2["w"], pb2["b"],
      we["w1"], we["b1"], we["s1"], we["t1"], we["w2"], we["b2"],
      expand, tail["w3"], tail["s2"], tail["t2"], tail["s3"], tail["t3"])


# ---------------------------------------------------------------------------
# Parameter init (deterministic, PyTorch-default-like)
# ---------------------------------------------------------------------------
def init_linear(key, cin, cout, bias=True):
    kw, kb = jax.random.split(key)
    bound = 1.0 / math.sqrt(cin)
    w = jax.random.uniform(kw, (cin, cout), F32, -bound, bound)
    if bias:
        b = jax.random.uniform(kb, (1, cout), F32, -bound, bound)
    else:
        b = jnp.zeros((1, cout), F32)
    return w, b


def init_bn(key, c, eps=1e-5):
    kg, kb = jax.random.split(key)
    gamma = 1.0 + 0.1 * jax.random.normal(kg, (1, c), F32)
    beta = 0.1 * jax.random.normal(kb, (1, c), F32)
    running_mean = jnp.zeros((1, c), F32)
    running_var = jnp.ones((1, c), F32)
    scale = gamma / jnp.sqrt(running_var + eps)
    shift = beta - running_mean * scale
    return scale, shift


def _identity_affine(c):
    return jnp.ones((1, c), F32), jnp.zeros((1, c), F32)


def init_params(key, depth, in_channels, embed_channels, groups):
    keys = iter(jax.random.split(key, 4 + 20 * depth))
    c = embed_channels
    params = {}

    w, _ = init_linear(next(keys), in_channels, c, bias=False)   # proj Linear(bias=False)
    s, t = init_bn(next(keys), c)
    params["proj"] = dict(w=w, b=jnp.zeros((1, c), F32), s=s, t=t)

    blocks = []
    for _ in range(depth):
        blk = {}
        w, b = init_linear(next(keys), c, c, bias=False)          # fc1 + norm1
        s, t = init_bn(next(keys), c)
        blk["fc1"] = dict(w=w, b=b, s=s, t=t)
        for name in ("q", "k"):                                   # linear_q / linear_k (+BN+ReLU)
            w, b = init_linear(next(keys), c, c, bias=True)
            s, t = init_bn(next(keys), c)
            blk[name] = dict(w=w, b=b, s=s, t=t)
        w, b = init_linear(next(keys), c, c, bias=True)           # linear_v (plain)
        ones, zeros = _identity_affine(c)
        blk["v"] = dict(w=w, b=b, s=ones, t=zeros)
        w, b = init_linear(next(keys), 3, c, bias=True)           # linear_p_bias[0] + BN + ReLU
        s, t = init_bn(next(keys), c)
        blk["pb1"] = dict(w=w, b=b, s=s, t=t)
        w, b = init_linear(next(keys), c, c, bias=True)           # linear_p_bias[3]
        blk["pb2"] = dict(w=w, b=b, s=ones, t=zeros)
        w1, b1 = init_linear(next(keys), c, groups, bias=True)    # weight_encoding
        s1, t1 = init_bn(next(keys), groups)
        w2, b2 = init_linear(next(keys), groups, groups, bias=True)
        blk["we"] = dict(w1=w1, b1=b1, s1=s1, t1=t1, w2=w2, b2=b2)
        w3, _ = init_linear(next(keys), c, c, bias=False)         # fc3 + norm2 + norm3
        s2, t2 = init_bn(next(keys), c)
        s3, t3 = init_bn(next(keys), c)
        blk["tail"] = dict(w3=w3, s2=s2, t2=t2, s3=s3, t3=t3)
        blocks.append(blk)
    params["blocks"] = blocks
    return params


# ---------------------------------------------------------------------------
# Forward (glue around the Pallas kernels)
# ---------------------------------------------------------------------------
def knn(coord, k):
    # TODO(synk): O(N^2) single-batch kNN in plain JAX (stands in for pointops.knn_query).
    d2 = jnp.sum((coord[:, None, :] - coord[None, :, :]) ** 2, axis=-1)
    return jnp.argsort(d2, axis=1)[:, :k].astype(jnp.int32)


def gva_patch_embed_forward(params, coord, feat, offset, *, groups, neighbours):
    pp = params["proj"]
    feat = fused_linear(feat, pp["w"], pp["b"], pp["s"], pp["t"], relu=True)

    ref_idx = knn(coord, neighbours)                      # pointops.knn_query
    mask = (ref_idx >= 0).astype(F32)                     # torch.sign(idx + 1)
    n, k = ref_idx.shape
    c = feat.shape[1]
    gi = c // groups
    pos = (coord[ref_idx] - coord[:, None, :]) * mask[:, :, None]   # grouping with_xyz part
    expand = jnp.repeat(jnp.eye(groups, dtype=F32), gi, axis=1)     # (G, C) 0/1 expansion

    rmask = jnp.concatenate([jnp.ones((1, 2 * c), F32), jnp.zeros((1, c), F32)], axis=1)

    for blk in params["blocks"]:
        identity = feat
        # fused fc1+norm1+relu + concatenated q/k/v projection (one lane-dense output)
        wqkv = jnp.concatenate([blk["q"]["w"], blk["k"]["w"], blk["v"]["w"]], axis=1)
        bqkv = jnp.concatenate([blk["q"]["b"], blk["k"]["b"], blk["v"]["b"]], axis=1)
        sqkv = jnp.concatenate([blk["q"]["s"], blk["k"]["s"], blk["v"]["s"]], axis=1)
        tqkv = jnp.concatenate([blk["q"]["t"], blk["k"]["t"], blk["v"]["t"]], axis=1)
        qkv = fc1_qkv(feat, blk["fc1"]["w"], blk["fc1"]["s"], blk["fc1"]["t"],
                      wqkv, bqkv, sqkv, tqkv, rmask)
        q = qkv[:, :c]
        # pointops.grouping (feature part); single gather of concatenated [key|value]
        # TODO(synk): move this gather into the GVA kernel (scalar-prefetched
        # indices + manual DMA) instead of materializing kv_g in HBM.
        kv_g = qkv[:, c:][ref_idx]
        feat = gva_block(q, kv_g, pos, mask, identity, blk, expand)
    return coord, feat, offset


# ---------------------------------------------------------------------------
# Pure-JAX reference (same math) used to validate the kernels
# ---------------------------------------------------------------------------
def _ref_forward(params, coord, feat, offset, *, groups, neighbours):
    def lin(x, d, relu):
        y = (x @ d["w"] + d["b"]) * d["s"] + d["t"]
        return jnp.maximum(y, 0.0) if relu else y

    feat = lin(feat, params["proj"], True)
    ref_idx = knn(coord, neighbours)
    mask = (ref_idx >= 0).astype(F32)
    n, k = ref_idx.shape
    pos = (coord[ref_idx] - coord[:, None, :]) * mask[:, :, None]
    for blk in params["blocks"]:
        identity = feat
        f1 = lin(feat, blk["fc1"], True)
        q = lin(f1, blk["q"], True)
        kf = lin(f1, blk["k"], True)
        vf = lin(f1, blk["v"], False)
        k_g, v_g = kf[ref_idx], vf[ref_idx]
        peb = lin(lin(pos, blk["pb1"], True), blk["pb2"], False)
        rel = k_g - q[:, None, :] + peb
        val = v_g + peb
        we = blk["we"]
        w = jnp.maximum((rel @ we["w1"] + we["b1"]) * we["s1"] + we["t1"], 0.0)
        w = w @ we["w2"] + we["b2"]
        w = jax.nn.softmax(w, axis=1) * mask[:, :, None]
        val4 = val.reshape(n, k, groups, -1)
        out = jnp.einsum("nsgi,nsg->ngi", val4, w).reshape(n, -1)
        t = blk["tail"]
        x = jnp.maximum(out * t["s2"] + t["t2"], 0.0)
        y = (x @ t["w3"]) * t["s3"] + t["t3"]
        feat = jnp.maximum(identity + y, 0.0)
    return feat


if __name__ == "__main__":
    depth, in_channels, embed_channels, groups, neighbours = 2, 6, 32, 4, 8
    n_points = 128

    key = jax.random.PRNGKey(0)
    kc, kf, kp = jax.random.split(key, 3)
    coord = jax.random.uniform(kc, (n_points, 3), F32)
    feat = jax.random.normal(kf, (n_points, in_channels), F32)
    offset = jnp.array([n_points], jnp.int32)
    params = init_params(kp, depth, in_channels, embed_channels, groups)

    _, out, _ = gva_patch_embed_forward(params, coord, feat, offset,
                                        groups=groups, neighbours=neighbours)
    out = jax.block_until_ready(out)

    ref = jax.block_until_ready(
        _ref_forward(params, coord, feat, offset, groups=groups, neighbours=neighbours))
    # tolerance absorbs the approx-reciprocal softmax normalization
    if not np.allclose(np.asarray(out), np.asarray(ref), atol=2e-2, rtol=2e-2):
        err = float(jnp.max(jnp.abs(out - ref)))
        raise AssertionError(f"Pallas output mismatch vs reference, max abs err = {err}")
    print("KERNEL_OK")
</pallas_src>

<mosaic_0001>
module attributes {stable_mosaic.version = 11 : i64} {
  func.func @_linear_bn_act_kernel(%arg0: i32, %arg1: memref<128x6xf32, #tpu.memory_space<vmem>>, %arg2: memref<6x32xf32, #tpu.memory_space<vmem>>, %arg3: memref<1x32xf32, #tpu.memory_space<vmem>>, %arg4: memref<1x32xf32, #tpu.memory_space<vmem>>, %arg5: memref<1x32xf32, #tpu.memory_space<vmem>>, %arg6: memref<128x32xf32, #tpu.memory_space<vmem>>) attributes {dimension_semantics = [#tpu.dimension_semantics<parallel>], iteration_bounds = array<i64: 1>, scalar_prefetch = 0 : i64, scratch_operands = 0 : i64, tpu.core_type = #tpu.core_type<tc>, window_params = [{transform_indices = @transform_0, window_bounds = array<i64: 128, 6>}, {pipeline_mode = #tpu.pipeline_mode<synchronous>, transform_indices = @transform_1, window_bounds = array<i64: 6, 32>}, {pipeline_mode = #tpu.pipeline_mode<synchronous>, transform_indices = @transform_2, window_bounds = array<i64: 1, 32>}, {pipeline_mode = #tpu.pipeline_mode<synchronous>, transform_indices = @transform_3, window_bounds = array<i64: 1, 32>}, {pipeline_mode = #tpu.pipeline_mode<synchronous>, transform_indices = @transform_4, window_bounds = array<i64: 1, 32>}, {transform_indices = @transform_5, window_bounds = array<i64: 128, 32>}]} {
    %c0 = arith.constant 0 : index
    %c0_0 = arith.constant 0 : index
    %0 = vector.load %arg1[%c0, %c0_0] : memref<128x6xf32, #tpu.memory_space<vmem>>, vector<128x6xf32>
    %c0_1 = arith.constant 0 : index
    %c0_2 = arith.constant 0 : index
    %1 = vector.load %arg2[%c0_1, %c0_2] : memref<6x32xf32, #tpu.memory_space<vmem>>, vector<6x32xf32>
    %cst = arith.constant dense<0.000000e+00> : vector<128x32xf32>
    %2 = tpu.matmul %0, %1, %cst {dimension_numbers = #tpu.dot_dimension_numbers<[1], [0], [0], [1], [0, 0, 1, 1], [], []>} : vector<128x6xf32>, vector<6x32xf32>, vector<128x32xf32> -> vector<128x32xf32>
    %c0_3 = arith.constant 0 : index
    %c0_4 = arith.constant 0 : index
    %3 = vector.load %arg3[%c0_3, %c0_4] : memref<1x32xf32, #tpu.memory_space<vmem>>, vector<1x32xf32>
    %4 = vector.broadcast %3 : vector<1x32xf32> to vector<128x32xf32>
    %5 = arith.addf %2, %4 : vector<128x32xf32>
    %c0_5 = arith.constant 0 : index
    %c0_6 = arith.constant 0 : index
    %6 = vector.load %arg4[%c0_5, %c0_6] : memref<1x32xf32, #tpu.memory_space<vmem>>, vector<1x32xf32>
    %7 = vector.broadcast %6 : vector<1x32xf32> to vector<128x32xf32>
    %8 = arith.mulf %5, %7 : vector<128x32xf32>
    %c0_7 = arith.constant 0 : index
    %c0_8 = arith.constant 0 : index
    %9 = vector.load %arg5[%c0_7, %c0_8] : memref<1x32xf32, #tpu.memory_space<vmem>>, vector<1x32xf32>
    %10 = vector.broadcast %9 : vector<1x32xf32> to vector<128x32xf32>
    %11 = arith.addf %8, %10 : vector<128x32xf32>
    %cst_9 = arith.constant 0.000000e+00 : f32
    %12 = vector.broadcast %cst_9 : f32 to vector<128x32xf32>
    %13 = arith.maximumf %11, %12 : vector<128x32xf32>
    %c0_10 = arith.constant 0 : index
    %c0_11 = arith.constant 0 : index
    %14 = vector.load %arg6[%c0_10, %c0_11] : memref<128x32xf32, #tpu.memory_space<vmem>>, vector<128x32xf32>
    tpu.vector_store %arg6[%c0_10, %c0_11], %13 {strides = array<i32>} : memref<128x32xf32, #tpu.memory_space<vmem>>, vector<128x32xf32>,
    return
  }
  func.func @transform_0(%arg0: i32) -> (i32, i32) {
    %c0_i32 = arith.constant 0 : i32
    %c0_i32_0 = arith.constant 0 : i32
    return %arg0, %c0_i32 : i32, i32
  }
  func.func @transform_1(%arg0: i32) -> (i32, i32) {
    %c0_i32 = arith.constant 0 : i32
    %c0_i32_0 = arith.constant 0 : i32
    %c0_i32_1 = arith.constant 0 : i32
    return %c0_i32, %c0_i32_0 : i32, i32
  }
  func.func @transform_2(%arg0: i32) -> (i32, i32) {
    %c0_i32 = arith.constant 0 : i32
    %c0_i32_0 = arith.constant 0 : i32
    %c0_i32_1 = arith.constant 0 : i32
    return %c0_i32, %c0_i32_0 : i32, i32
  }
  func.func @transform_3(%arg0: i32) -> (i32, i32) {
    %c0_i32 = arith.constant 0 : i32
    %c0_i32_0 = arith.constant 0 : i32
    %c0_i32_1 = arith.constant 0 : i32
    return %c0_i32, %c0_i32_0 : i32, i32
  }
  func.func @transform_4(%arg0: i32) -> (i32, i32) {
    %c0_i32 = arith.constant 0 : i32
    %c0_i32_0 = arith.constant 0 : i32
    %c0_i32_1 = arith.constant 0 : i32
    return %c0_i32, %c0_i32_0 : i32, i32
  }
  func.func @transform_5(%arg0: i32) -> (i32, i32) {
    %c0_i32 = arith.constant 0 : i32
    %c0_i32_0 = arith.constant 0 : i32
    return %arg0, %c0_i32 : i32, i32
  }
}

</mosaic_0001>

<llo_original>
// kernel: tpu_custom_call.1
$region0: #{tpu_custom_call.1}
  #allocation0 [shape = 'u32[]', space=smem, size = 0x4, offset = 0x4, fixed_abs, tag = 'smem constant byte address 0x4 - core index']
  #allocation1 [shape = 'u32[144,128]{1,0:T(1,128)}', space=vmem, size = 0x12000, scoped, tag = 'internal scratch']
  %s0 = inlined_call_operand.vmem [shape: f32[128,6], index: 0, kind: input, shape index: {}]
  %s1 = inlined_call_operand.vmem [shape: f32[6,32], index: 1, kind: input, shape index: {}]
  %s2 = inlined_call_operand.vmem [shape: f32[1,32], index: 2, kind: input, shape index: {}]
  %s3 = inlined_call_operand.vmem [shape: f32[1,32], index: 3, kind: input, shape index: {}]
  %s4 = inlined_call_operand.vmem [shape: f32[1,32], index: 4, kind: input, shape index: {}]
  %s5 = inlined_call_operand.vmem [shape: f32[128,32], index: 5, kind: output, shape index: {}]
  %s6 = sld [smem:[#allocation0]]
  $region30: #{tpu_custom_call.1} parent=0
    _
  %s8 = ssub.s32 1, %s6
  %s9 = scalar_select 0, %s8, %s6
  // Predicated region
  $region2: #{tpu_custom_call.1} parent=0 // pred_check
    _
  $region3: #{tpu_custom_call.1} parent=0 // pred_check_branch
    %11 = sbr.rel (0) target = $region5
  $region4: #{tpu_custom_call.1} parent=0 // pred_region
    _
  $region5: #{tpu_custom_call.1} parent=0 // pred_fallthru
    _
  // Predicated region
  $region6: #{tpu_custom_call.1} parent=0 // pred_check
    _
  $region7: #{tpu_custom_call.1} parent=0 // pred_check_branch
    %13 = sbr.rel (0) target = $region9
  $region8: #{tpu_custom_call.1} parent=0 // pred_region
    _
  $region9: #{tpu_custom_call.1} parent=0 // pred_fallthru
    _
  // Predicated region
  $region10: #{tpu_custom_call.1} parent=0 // pred_check
    _
  $region11: #{tpu_custom_call.1} parent=0 // pred_check_branch
    %15 = sbr.rel (0) target = $region13
  $region12: #{tpu_custom_call.1} parent=0 // pred_region
    _
  $region13: #{tpu_custom_call.1} parent=0 // pred_fallthru
    _
  // Predicated region
  $region14: #{tpu_custom_call.1} parent=0 // pred_check
    _
  $region15: #{tpu_custom_call.1} parent=0 // pred_check_branch
    %17 = sbr.rel (0) target = $region17
  $region16: #{tpu_custom_call.1} parent=0 // pred_region
    _
  $region17: #{tpu_custom_call.1} parent=0 // pred_fallthru
    _
  // Predicated region
  $region18: #{tpu_custom_call.1} parent=0 // pred_check
    _
  $region19: #{tpu_custom_call.1} parent=0 // pred_check_branch
    %19 = sbr.rel (0) target = $region21
  $region20: #{tpu_custom_call.1} parent=0 // pred_region
    _
  $region21: #{tpu_custom_call.1} parent=0 // pred_fallthru
    _
  %v20 = vld [vmem:[%s0] sm:$0xff]
  %v21 = vld [vmem:[%s0 + $0x8] sm:$0xff]
  %v22 = vld [vmem:[%s0 + $0x10] sm:$0xff]
  %v23 = vld [vmem:[%s0 + $0x18] sm:$0xff]
  %v24 = vld [vmem:[%s0 + $0x20] sm:$0xff]
  %v25 = vld [vmem:[%s0 + $0x28] sm:$0xff]
  %v26 = vld [vmem:[%s0 + $0x30] sm:$0xff]
  %v27 = vld [vmem:[%s0 + $0x38] sm:$0xff]
  %v28 = vld [vmem:[%s0 + $0x40] sm:$0xff]
  %v29 = vld [vmem:[%s0 + $0x48] sm:$0xff]
  %v30 = vld [vmem:[%s0 + $0x50] sm:$0xff]
  %v31 = vld [vmem:[%s0 + $0x58] sm:$0xff]
  %v32 = vld [vmem:[%s0 + $0x60] sm:$0xff]
  %v33 = vld [vmem:[%s0 + $0x68] sm:$0xff]
  %v34 = vld [vmem:[%s0 + $0x70] sm:$0xff]
  %v35 = vld [vmem:[%s0 + $0x78] sm:$0xff]
  %v36 = vld [vmem:[%s1] sm:$0x3f]
  %v37 = vld [vmem:[%s2] sm:$0x1]
  %v39 = vlaneseq
  %v40 = vshrl.u32 %v39, 7
  %v41 = vsub.s32 0, %v40
  %v42 = vrot.slane %v37, %v41
  %vm44 = vcmask 48128
  %v46 = vsel %vm44, %v20, 0
  %v49 = vsel %vm44, %v21, 0
  %v52 = vsel %vm44, %v22, 0
  %v55 = vsel %vm44, %v23, 0
  %v58 = vsel %vm44, %v24, 0
  %v61 = vsel %vm44, %v25, 0
  %v64 = vsel %vm44, %v26, 0
  %v67 = vsel %vm44, %v27, 0
  %v70 = vsel %vm44, %v28, 0
  %v73 = vsel %vm44, %v29, 0
  %v76 = vsel %vm44, %v30, 0
  %v79 = vsel %vm44, %v31, 0
  %v82 = vsel %vm44, %v32, 0
  %v85 = vsel %vm44, %v33, 0
  %v88 = vsel %vm44, %v34, 0
  %v91 = vsel %vm44, %v35, 0
  %vm93 = vcmask 1045504
  %v95 = vsel %vm93, %v36, 0
  %97 = vmatprep.subr.mxu0 0.0
  %98 = vmatpush1.msra.mxu0 %v95
  %99 = vmatprep.subr.mxu0 0.0
  %100 = vmatpush1.msra.mxu0 0.0
  %101 = vmatprep.subr.mxu0 0.0
  %102 = vmatpush1.msra.mxu0 0.0
  %103 = vmatprep.subr.mxu0 0.0
  %104 = vmatpush1.msra.mxu0 0.0
  %105 = vmatprep.subr.mxu0 0.0
  %106 = vmatpush1.msra.mxu0 0.0
  %107 = vmatprep.subr.mxu0 0.0
  %108 = vmatpush1.msra.mxu0 0.0
  %109 = vmatprep.subr.mxu0 0.0
  %110 = vmatpush1.msra.mxu0 0.0
  %111 = vmatprep.subr.mxu0 0.0
  %112 = vmatpush1.msra.mxu0 0.0
  %113 = vmatprep.subr.mxu0 0.0
  %114 = vmatpush1.msra.mxu0 0.0
  %115 = vmatprep.subr.mxu0 0.0
  %116 = vmatpush1.msra.mxu0 0.0
  %117 = vmatprep.subr.mxu0 0.0
  %118 = vmatpush1.msra.mxu0 0.0
  %119 = vmatprep.subr.mxu0 0.0
  %120 = vmatpush1.msra.mxu0 0.0
  %121 = vmatprep.subr.mxu0 0.0
  %122 = vmatpush1.msra.mxu0 0.0
  %123 = vmatprep.subr.mxu0 0.0
  %124 = vmatpush1.msra.mxu0 0.0
  %125 = vmatprep.subr.mxu0 0.0
  %126 = vmatpush1.msra.mxu0 0.0
  %127 = vmatprep.subr.mxu0 0.0
  %128 = vmatpush1.msra.mxu0 0.0
  %129 = vmatprep.subr.mxu0 0.0
  %130 = vmatpush1.msra.mxu0 0.0
  %131 = vmatprep.subr.mxu0 0.0
  %132 = vmatpush1.msra.mxu0 0.0
  %133 = vmatprep.subr.mxu0 0.0
  %134 = vmatpush1.msra.mxu0 0.0
  %135 = vmatprep.subr.mxu0 0.0
  %136 = vmatpush1.msra.mxu0 0.0
  %137 = vmatprep.subr.mxu0 0.0
  %138 = vmatpush1.msra.mxu0 0.0
  %139 = vmatprep.subr.mxu0 0.0
  %140 = vmatpush1.msra.mxu0 0.0
  %141 = vmatprep.subr.mxu0 0.0
  %142 = vmatpush1.msra.mxu0 0.0
  %143 = vmatprep.subr.mxu0 0.0
  %144 = vmatpush1.msra.mxu0 0.0
  %145 = vmatprep.subr.mxu0 0.0
  %146 = vmatpush1.msra.mxu0 0.0
  %147 = vmatprep.subr.mxu0 0.0
  %148 = vmatpush1.msra.mxu0 0.0
  %149 = vmatprep.subr.mxu0 0.0
  %150 = vmatpush1.msra.mxu0 0.0
  %151 = vmatprep.subr.mxu0 0.0
  %152 = vmatpush1.msra.mxu0 0.0
  %153 = vmatprep.subr.mxu0 0.0
  %154 = vmatpush1.msra.mxu0 0.0
  %155 = vmatprep.subr.mxu0 0.0
  %156 = vmatpush1.msra.mxu0 0.0
  %157 = vmatprep.subr.mxu0 0.0
  %158 = vmatpush1.msra.mxu0 0.0
  %159 = vmatprep.subr.mxu0 0.0
  %160 = vmatpush1.msra.mxu0 0.0
  %161 = vmatprep.mubr.f32.mxu0 0.0
  %162 = vmatmul.mubr.f32.gmra.mrb[0].mxu0 %v46
  %v163 = vpop.f32.mrb[0].mxu0
  %v164 = vadd.f32 %v42, %v163
  %v165 = vpop.f32.mrb[0].mxu0
  %166 = vmatprep.mubr.f32.mxu0 0.0
  %167 = vmatmul.mubr.f32.gmra.mrb[0].mxu0 %v49
  %v168 = vpop.f32.mrb[0].mxu0
  %v169 = vadd.f32 %v42, %v168
  %v170 = vpop.f32.mrb[0].mxu0
  %171 = vmatprep.mubr.f32.mxu0 0.0
  %172 = vmatmul.mubr.f32.gmra.mrb[0].mxu0 %v52
  %v173 = vpop.f32.mrb[0].mxu0
  %v174 = vadd.f32 %v42, %v173
  %v175 = vpop.f32.mrb[0].mxu0
  %176 = vmatprep.mubr.f32.mxu0 0.0
  %177 = vmatmul.mubr.f32.gmra.mrb[0].mxu0 %v55
  %v178 = vpop.f32.mrb[0].mxu0
  %v179 = vadd.f32 %v42, %v178
  %v180 = vpop.f32.mrb[0].mxu0
  %181 = vmatprep.mubr.f32.mxu0 0.0
  %182 = vmatmul.mubr.f32.gmra.mrb[0].mxu0 %v58
  %v183 = vpop.f32.mrb[0].mxu0
  %v184 = vadd.f32 %v42, %v183
  %v185 = vpop.f32.mrb[0].mxu0
  %186 = vmatprep.mubr.f32.mxu0 0.0
  %187 = vmatmul.mubr.f32.gmra.mrb[0].mxu0 %v61
  %v188 = vpop.f32.mrb[0].mxu0
  %v189 = vadd.f32 %v42, %v188
  %v190 = vpop.f32.mrb[0].mxu0
  %191 = vmatprep.mubr.f32.mxu0 0.0
  %192 = vmatmul.mubr.f32.gmra.mrb[0].mxu0 %v64
  %v193 = vpop.f32.mrb[0].mxu0
  %v194 = vadd.f32 %v42, %v193
  %v195 = vpop.f32.mrb[0].mxu0
  %196 = vmatprep.mubr.f32.mxu0 0.0
  %197 = vmatmul.mubr.f32.gmra.mrb[0].mxu0 %v67
  %v198 = vpop.f32.mrb[0].mxu0
  %v199 = vadd.f32 %v42, %v198
  %v200 = vpop.f32.mrb[0].mxu0
  %201 = vmatprep.mubr.f32.mxu0 0.0
  %202 = vmatmul.mubr.f32.gmra.mrb[0].mxu0 %v70
  %v203 = vpop.f32.mrb[0].mxu0
  %v204 = vadd.f32 %v42, %v203
  %v205 = vpop.f32.mrb[0].mxu0
  %206 = vmatprep.mubr.f32.mxu0 0.0
  %207 = vmatmul.mubr.f32.gmra.mrb[0].mxu0 %v73
  %v208 = vpop.f32.mrb[0].mxu0
  %v209 = vadd.f32 %v42, %v208
  %v210 = vpop.f32.mrb[0].mxu0
  %211 = vmatprep.mubr.f32.mxu0 0.0
  %212 = vmatmul.mubr.f32.gmra.mrb[0].mxu0 %v76
  %v213 = vpop.f32.mrb[0].mxu0
  %v214 = vadd.f32 %v42, %v213
  %v215 = vpop.f32.mrb[0].mxu0
  %216 = vmatprep.mubr.f32.mxu0 0.0
  %217 = vmatmul.mubr.f32.gmra.mrb[0].mxu0 %v79
  %v218 = vpop.f32.mrb[0].mxu0
  %v219 = vadd.f32 %v42, %v218
  %v220 = vpop.f32.mrb[0].mxu0
  %221 = vmatprep.mubr.f32.mxu0 0.0
  %222 = vmatmul.mubr.f32.gmra.mrb[0].mxu0 %v82
  %v223 = vpop.f32.mrb[0].mxu0
  %v224 = vadd.f32 %v42, %v223
  %v225 = vpop.f32.mrb[0].mxu0
  %226 = vmatprep.mubr.f32.mxu0 0.0
  %227 = vmatmul.mubr.f32.gmra.mrb[0].mxu0 %v85
  %v228 = vpop.f32.mrb[0].mxu0
  %v229 = vadd.f32 %v42, %v228
  %v230 = vpop.f32.mrb[0].mxu0
  %231 = vmatprep.mubr.f32.mxu0 0.0
  %232 = vmatmul.mubr.f32.gmra.mrb[0].mxu0 %v88
  %v233 = vpop.f32.mrb[0].mxu0
  %v234 = vadd.f32 %v42, %v233
  %v235 = vpop.f32.mrb[0].mxu0
  %236 = vmatprep.mubr.f32.mxu0 0.0
  %237 = vmatmul.mubr.f32.gmra.mrb[0].mxu0 %v91
  %v238 = vpop.f32.mrb[0].mxu0
  %v239 = vadd.f32 %v42, %v238
  %v240 = vpop.f32.mrb[0].mxu0
  %241 = vdwg.mxu0
  %v242 = vld [vmem:[%s3] sm:$0x1]
  %v244 = vlaneseq
  %v245 = vshrl.u32 %v244, 7
  %v246 = vsub.s32 0, %v245
  %v247 = vrot.slane %v242, %v246
  %v249 = vmul.f32 %v164, %v247
  %v250 = vmul.f32 %v169, %v247
  %v251 = vmul.f32 %v174, %v247
  %v252 = vmul.f32 %v179, %v247
  %v253 = vmul.f32 %v184, %v247
  %v254 = vmul.f32 %v189, %v247
  %v255 = vmul.f32 %v194, %v247
  %v256 = vmul.f32 %v199, %v247
  %v257 = vmul.f32 %v204, %v247
  %v258 = vmul.f32 %v209, %v247
  %v259 = vmul.f32 %v214, %v247
  %v260 = vmul.f32 %v219, %v247
  %v261 = vmul.f32 %v224, %v247
  %v262 = vmul.f32 %v229, %v247
  %v263 = vmul.f32 %v234, %v247
  %v264 = vmul.f32 %v239, %v247
  %v265 = vld [vmem:[%s4] sm:$0x1]
  %v267 = vlaneseq
  %v268 = vshrl.u32 %v267, 7
  %v269 = vsub.s32 0, %v268
  %v270 = vrot.slane %v265, %v269
  %v272 = vadd.f32 %v249, %v270
  %v273 = vadd.f32 %v250, %v270
  %v274 = vadd.f32 %v251, %v270
  %v275 = vadd.f32 %v252, %v270
  %v276 = vadd.f32 %v253, %v270
  %v277 = vadd.f32 %v254, %v270
  %v278 = vadd.f32 %v255, %v270
  %v279 = vadd.f32 %v256, %v270
  %v280 = vadd.f32 %v257, %v270
  %v281 = vadd.f32 %v258, %v270
  %v282 = vadd.f32 %v259, %v270
  %v283 = vadd.f32 %v260, %v270
  %v284 = vadd.f32 %v261, %v270
  %v285 = vadd.f32 %v262, %v270
  %v286 = vadd.f32 %v263, %v270
  %v287 = vadd.f32 %v264, %v270
  %v288 = vmax.f32 %v272, 0.0
  %v289 = vmax.f32 %v273, 0.0
  %v290 = vmax.f32 %v274, 0.0
  %v291 = vmax.f32 %v275, 0.0
  %v292 = vmax.f32 %v276, 0.0
  %v293 = vmax.f32 %v277, 0.0
  %v294 = vmax.f32 %v278, 0.0
  %v295 = vmax.f32 %v279, 0.0
  %v296 = vmax.f32 %v280, 0.0
  %v297 = vmax.f32 %v281, 0.0
  %v298 = vmax.f32 %v282, 0.0
  %v299 = vmax.f32 %v283, 0.0
  %v300 = vmax.f32 %v284, 0.0
  %v301 = vmax.f32 %v285, 0.0
  %v302 = vmax.f32 %v286, 0.0
  %v303 = vmax.f32 %v287, 0.0
  %vm304 = vcmask 261120
  %305 = vst.msk [vmem:[%s5] sm:$0xff] %vm304, %v288
  %306 = vst.msk [vmem:[%s5 + $0x8] sm:$0xff] %vm304, %v289
  %307 = vst.msk [vmem:[%s5 + $0x10] sm:$0xff] %vm304, %v290
  %308 = vst.msk [vmem:[%s5 + $0x18] sm:$0xff] %vm304, %v291
  %309 = vst.msk [vmem:[%s5 + $0x20] sm:$0xff] %vm304, %v292
  %310 = vst.msk [vmem:[%s5 + $0x28] sm:$0xff] %vm304, %v293
  %311 = vst.msk [vmem:[%s5 + $0x30] sm:$0xff] %vm304, %v294
  %312 = vst.msk [vmem:[%s5 + $0x38] sm:$0xff] %vm304, %v295
  %313 = vst.msk [vmem:[%s5 + $0x40] sm:$0xff] %vm304, %v296
  %314 = vst.msk [vmem:[%s5 + $0x48] sm:$0xff] %vm304, %v297
  %315 = vst.msk [vmem:[%s5 + $0x50] sm:$0xff] %vm304, %v298
  %316 = vst.msk [vmem:[%s5 + $0x58] sm:$0xff] %vm304, %v299
  %317 = vst.msk [vmem:[%s5 + $0x60] sm:$0xff] %vm304, %v300
  %318 = vst.msk [vmem:[%s5 + $0x68] sm:$0xff] %vm304, %v301
  %319 = vst.msk [vmem:[%s5 + $0x70] sm:$0xff] %vm304, %v302
  %320 = vst.msk [vmem:[%s5 + $0x78] sm:$0xff] %vm304, %v303
  // Predicated region
  $region22: #{tpu_custom_call.1} parent=0 // pred_check
    _
  $region23: #{tpu_custom_call.1} parent=0 // pred_check_branch
    %322 = sbr.rel (0) target = $region25
  $region24: #{tpu_custom_call.1} parent=0 // pred_region
    _
  $region25: #{tpu_custom_call.1} parent=0 // pred_fallthru
    _
  // Predicated region
  $region26: #{tpu_custom_call.1} parent=0 // pred_check
    _
  $region27: #{tpu_custom_call.1} parent=0 // pred_check_branch
    %324 = sbr.rel (0) target = $region29
  $region28: #{tpu_custom_call.1} parent=0 // pred_region
    _
  $region29: #{tpu_custom_call.1} parent=0 // pred_fallthru
    _

</llo_original>
